<compile_context>
chip_gen: v7x
topology: tpu7x:2x2x1
jax: 0.10.0
libtpu: 0.0.40
codegen_flags: <defaults>
</compile_context>

<pallas_src>
import jax
import jax.numpy as jnp
from jax.experimental import pallas as pl
from jax.experimental.pallas import tpu as pltpu


def _kernel(x_ref, emb_ref, wv_ref, bv_ref, wp_ref, bp_ref, o_ref):
    """One (batch, hw_tile) grid step.

    x_ref:   (C, hw_tile)   feature tile (channels on sublanes, HW on lanes)
    emb_ref: (E, 1)         embedding column for this batch
    wv_ref:  (C, E)  bv_ref: (C, 1)   value Linear (column orientation)
    wp_ref:  (C, C)  bp_ref: (C, 1)   proj 1x1 conv (column orientation)
    o_ref:   (C, hw_tile)
    """
    emb_col = emb_ref[...]                                              # (E, 1)
    # v = Wv @ emb + bv              (value Linear)
    v = jnp.dot(wv_ref[...], emb_col,
                preferred_element_type=jnp.float32) + bv_ref[...]       # (C, 1)
    # r = Wp @ v + bp                (proj 1x1 conv of a spatially-constant map)
    r = jnp.dot(wp_ref[...], v,
                preferred_element_type=jnp.float32) + bp_ref[...]       # (C, 1)
    # residual add, r broadcast along the lane (HW) axis
    o_ref[...] = (x_ref[...] + r).astype(o_ref.dtype)


def _choose_hw_tile(hw, c, itemsize=4, vmem_budget_bytes=2 * 1024 * 1024):
    """Largest multiple-of-128 divisor of `hw` whose (c, tile) buffer fits the
    per-buffer VMEM budget; falls back to the full row (block == full dim is
    always legal) when `hw` has no suitable divisor or already fits."""
    max_tile = max(128, (vmem_budget_bytes // max(1, c * itemsize)) // 128 * 128)
    if hw <= max_tile:
        return hw
    best = None
    for t in range(min(max_tile, hw // 128 * 128), 127, -128):
        if hw % t == 0:
            best = t
            break
    if best is None:
        return hw  # no 128-multiple divisor fits: whole row per step
    if best < 512 and c * hw * itemsize <= 4 * vmem_budget_bytes:
        return hw  # tiny tiles => per-step overhead dominates; take whole row
    return best


def cross_attention_block(x, emb, params):
    """x: (B, C, H, W), emb: (B, E). Returns (B, C, H, W)."""
    B, C, H, W = x.shape
    E = emb.shape[1]
    HW = H * W

    hw_tile = _choose_hw_tile(HW, C, itemsize=x.dtype.itemsize)
    n_tiles = HW // hw_tile

    # Free reshapes only (no transposes, no extra HBM traffic).
    x_flat = x.reshape(B, C, HW)       # (B, C, HW): C on sublanes, HW on lanes
    emb_col = emb.reshape(B, E, 1)     # per-batch column vector

    # Column-oriented weights so the per-batch result lands as (C, 1) and
    # broadcasts straight onto the (C, hw_tile) tile (no in-kernel transpose).
    wv = params["wv"]                  # (C, E)   nn.Linear weight (out, in)
    bv = params["bv"].reshape(C, 1)
    wp = params["wp"].reshape(C, C)    # (C_out, C_in) from 1x1 conv weight
    bp = params["bp"].reshape(C, 1)
    # params["wq"], ["bq"], ["wk"], ["bk"] cancel mathematically (softmax over
    # a size-1 axis is identically 1) and are intentionally not passed.

    const = lambda b, t: (0, 0)

    cost = pl.CostEstimate(
        flops=B * C * HW + B * n_tiles * 2 * (C * E + C * C),
        transcendentals=0,
        bytes_accessed=x.dtype.itemsize * 2 * B * C * HW
        + 4 * (B * E + C * E + C * C + 2 * C),
    )

    out_flat = pl.pallas_call(
        _kernel,
        out_shape=jax.ShapeDtypeStruct((B, C, HW), x.dtype),
        grid_spec=pltpu.PrefetchScalarGridSpec(
            num_scalar_prefetch=0,
            grid=(B, n_tiles),
            in_specs=[
                pl.BlockSpec((None, C, hw_tile), lambda b, t: (b, 0, t)),  # x
                pl.BlockSpec((None, E, 1), lambda b, t: (b, 0, 0)),        # emb[b]
                pl.BlockSpec((C, E), const),                               # Wv
                pl.BlockSpec((C, 1), const),                               # bv
                pl.BlockSpec((C, C), const),                               # Wp
                pl.BlockSpec((C, 1), const),                               # bp
            ],
            out_specs=pl.BlockSpec((None, C, hw_tile), lambda b, t: (b, 0, t)),
        ),
        compiler_params=pltpu.CompilerParams(
            dimension_semantics=("parallel", "parallel")),
        cost_estimate=cost,
    )(x_flat, emb_col, wv, bv, wp, bp)

    return out_flat.reshape(B, C, H, W)


def reference(x, emb, params):
    """Faithful (un-simplified) reference: q conv, logits, softmax, proj."""
    B, C, H, W = x.shape
    HW = H * W
    scale = float(C) ** -0.5
    wq = params["wq"].reshape(C, C); bq = params["bq"]
    wp = params["wp"].reshape(C, C); bp = params["bp"]

    x_flat = jnp.transpose(x.reshape(B, C, HW), (0, 2, 1))           # (B, HW, C)
    q = jnp.einsum("bnc,oc->bno", x_flat, wq) + bq                   # (B, HW, C)
    k = emb @ params["wk"].T + params["bk"]                          # (B, C)
    v = emb @ params["wv"].T + params["bv"]                          # (B, C)
    logits = jnp.einsum("bnc,bc->bn", q, k)[..., None] * scale       # (B, HW, 1)
    attn = jax.nn.softmax(logits, axis=-1)                           # all ones
    out = attn * v[:, None, :]                                       # (B, HW, C)
    out = jnp.einsum("bnc,oc->bno", out, wp) + bp
    y = x_flat + out
    return jnp.transpose(y, (0, 2, 1)).reshape(B, C, H, W)


if __name__ == "__main__":
    B, C, H, W, E = 2, 4, 16, 16, 32

    key = jax.random.PRNGKey(0)
    keys = jax.random.split(key, 10)

    x = jax.random.normal(keys[0], (B, C, H, W), dtype=jnp.float32)
    emb = jax.random.normal(keys[1], (B, E), dtype=jnp.float32)

    params = {
        "wq": jax.random.normal(keys[2], (C, C, 1, 1), dtype=jnp.float32) * 0.1,
        "bq": jax.random.normal(keys[3], (C,), dtype=jnp.float32) * 0.1,
        "wk": jax.random.normal(keys[4], (C, E), dtype=jnp.float32) * 0.1,
        "bk": jax.random.normal(keys[5], (C,), dtype=jnp.float32) * 0.1,
        "wv": jax.random.normal(keys[6], (C, E), dtype=jnp.float32) * 0.1,
        "bv": jax.random.normal(keys[7], (C,), dtype=jnp.float32) * 0.1,
        "wp": jax.random.normal(keys[8], (C, C, 1, 1), dtype=jnp.float32) * 0.1,
        "bp": jax.random.normal(keys[9], (C,), dtype=jnp.float32) * 0.1,
    }

    y = cross_attention_block(x, emb, params)
    y = jax.block_until_ready(y)

    y_ref = reference(x, emb, params)
    assert y.shape == (B, C, H, W)
    assert jnp.allclose(y, y_ref, atol=1e-4, rtol=1e-4), "mismatch vs reference"

    print("KERNEL_OK")
</pallas_src>

<mosaic_0001>
module attributes {stable_mosaic.version = 11 : i64} {
  func.func @_kernel(%arg0: i32, %arg1: i32, %arg2: memref<1x4x256xf32, #tpu.memory_space<vmem>>, %arg3: memref<1x32x1xf32, #tpu.memory_space<vmem>>, %arg4: memref<4x32xf32, #tpu.memory_space<vmem>>, %arg5: memref<4x1xf32, #tpu.memory_space<vmem>>, %arg6: memref<4x4xf32, #tpu.memory_space<vmem>>, %arg7: memref<4x1xf32, #tpu.memory_space<vmem>>, %arg8: memref<1x4x256xf32, #tpu.memory_space<vmem>>) attributes {dimension_semantics = [#tpu.dimension_semantics<parallel>, #tpu.dimension_semantics<parallel>], iteration_bounds = array<i64: 2, 1>, scalar_prefetch = 0 : i64, scratch_operands = 0 : i64, tpu.core_type = #tpu.core_type<tc>, window_params = [{transform_indices = @transform_0, window_bounds = array<i64: 1, 4, 256>}, {transform_indices = @transform_1, window_bounds = array<i64: 1, 32, 1>}, {pipeline_mode = #tpu.pipeline_mode<synchronous>, transform_indices = @transform_2, window_bounds = array<i64: 4, 32>}, {pipeline_mode = #tpu.pipeline_mode<synchronous>, transform_indices = @transform_3, window_bounds = array<i64: 4, 1>}, {pipeline_mode = #tpu.pipeline_mode<synchronous>, transform_indices = @transform_4, window_bounds = array<i64: 4, 4>}, {pipeline_mode = #tpu.pipeline_mode<synchronous>, transform_indices = @transform_5, window_bounds = array<i64: 4, 1>}, {transform_indices = @transform_6, window_bounds = array<i64: 1, 4, 256>}]} {
    %c0 = arith.constant 0 : index
    %c0_0 = arith.constant 0 : index
    %c0_1 = arith.constant 0 : index
    %0 = vector.load %arg3[%c0, %c0_0, %c0_1] : memref<1x32x1xf32, #tpu.memory_space<vmem>>, vector<1x32x1xf32>
    %1 = vector.shape_cast %0 : vector<1x32x1xf32> to vector<32x1xf32>
    %c0_2 = arith.constant 0 : index
    %c0_3 = arith.constant 0 : index
    %2 = vector.load %arg4[%c0_2, %c0_3] : memref<4x32xf32, #tpu.memory_space<vmem>>, vector<4x32xf32>
    %cst = arith.constant dense<0.000000e+00> : vector<4x1xf32>
    %3 = tpu.matmul %2, %1, %cst {dimension_numbers = #tpu.dot_dimension_numbers<[1], [0], [0], [1], [0, 0, 1, 1], [], []>} : vector<4x32xf32>, vector<32x1xf32>, vector<4x1xf32> -> vector<4x1xf32>
    %c0_4 = arith.constant 0 : index
    %c0_5 = arith.constant 0 : index
    %4 = vector.load %arg5[%c0_4, %c0_5] : memref<4x1xf32, #tpu.memory_space<vmem>>, vector<4x1xf32>
    %5 = arith.addf %3, %4 : vector<4x1xf32>
    %c0_6 = arith.constant 0 : index
    %c0_7 = arith.constant 0 : index
    %6 = vector.load %arg6[%c0_6, %c0_7] : memref<4x4xf32, #tpu.memory_space<vmem>>, vector<4x4xf32>
    %cst_8 = arith.constant dense<0.000000e+00> : vector<4x1xf32>
    %7 = tpu.matmul %6, %5, %cst_8 {dimension_numbers = #tpu.dot_dimension_numbers<[1], [0], [0], [1], [0, 0, 1, 1], [], []>} : vector<4x4xf32>, vector<4x1xf32>, vector<4x1xf32> -> vector<4x1xf32>
    %c0_9 = arith.constant 0 : index
    %c0_10 = arith.constant 0 : index
    %8 = vector.load %arg7[%c0_9, %c0_10] : memref<4x1xf32, #tpu.memory_space<vmem>>, vector<4x1xf32>
    %9 = arith.addf %7, %8 : vector<4x1xf32>
    %c0_11 = arith.constant 0 : index
    %c0_12 = arith.constant 0 : index
    %c0_13 = arith.constant 0 : index
    %10 = vector.load %arg2[%c0_11, %c0_12, %c0_13] : memref<1x4x256xf32, #tpu.memory_space<vmem>>, vector<1x4x256xf32>
    %11 = vector.shape_cast %10 : vector<1x4x256xf32> to vector<4x256xf32>
    %12 = vector.broadcast %9 : vector<4x1xf32> to vector<4x256xf32>
    %13 = arith.addf %11, %12 : vector<4x256xf32>
    %c0_14 = arith.constant 0 : index
    %c0_15 = arith.constant 0 : index
    %c0_16 = arith.constant 0 : index
    %14 = vector.load %arg8[%c0_14, %c0_15, %c0_16] : memref<1x4x256xf32, #tpu.memory_space<vmem>>, vector<1x4x256xf32>
    %15 = vector.shape_cast %14 : vector<1x4x256xf32> to vector<4x256xf32>
    %16 = vector.shape_cast %13 : vector<4x256xf32> to vector<1x4x256xf32>
    tpu.vector_store %arg8[%c0_14, %c0_15, %c0_16], %16 {strides = array<i32>} : memref<1x4x256xf32, #tpu.memory_space<vmem>>, vector<1x4x256xf32>,
    return
  }
  func.func @transform_0(%arg0: i32, %arg1: i32) -> (i32, i32, i32) {
    %c0_i32 = arith.constant 0 : i32
    %c0_i32_0 = arith.constant 0 : i32
    return %arg0, %c0_i32, %arg1 : i32, i32, i32
  }
  func.func @transform_1(%arg0: i32, %arg1: i32) -> (i32, i32, i32) {
    %c0_i32 = arith.constant 0 : i32
    %c0_i32_0 = arith.constant 0 : i32
    %c0_i32_1 = arith.constant 0 : i32
    return %arg0, %c0_i32, %c0_i32_0 : i32, i32, i32
  }
  func.func @transform_2(%arg0: i32, %arg1: i32) -> (i32, i32) {
    %c0_i32 = arith.constant 0 : i32
    %c0_i32_0 = arith.constant 0 : i32
    %c0_i32_1 = arith.constant 0 : i32
    return %c0_i32, %c0_i32_0 : i32, i32
  }
  func.func @transform_3(%arg0: i32, %arg1: i32) -> (i32, i32) {
    %c0_i32 = arith.constant 0 : i32
    %c0_i32_0 = arith.constant 0 : i32
    %c0_i32_1 = arith.constant 0 : i32
    return %c0_i32, %c0_i32_0 : i32, i32
  }
  func.func @transform_4(%arg0: i32, %arg1: i32) -> (i32, i32) {
    %c0_i32 = arith.constant 0 : i32
    %c0_i32_0 = arith.constant 0 : i32
    %c0_i32_1 = arith.constant 0 : i32
    return %c0_i32, %c0_i32_0 : i32, i32
  }
  func.func @transform_5(%arg0: i32, %arg1: i32) -> (i32, i32) {
    %c0_i32 = arith.constant 0 : i32
    %c0_i32_0 = arith.constant 0 : i32
    %c0_i32_1 = arith.constant 0 : i32
    return %c0_i32, %c0_i32_0 : i32, i32
  }
  func.func @transform_6(%arg0: i32, %arg1: i32) -> (i32, i32, i32) {
    %c0_i32 = arith.constant 0 : i32
    %c0_i32_0 = arith.constant 0 : i32
    return %arg0, %c0_i32, %arg1 : i32, i32, i32
  }
}

</mosaic_0001>

<llo_original>
// kernel: tpu_custom_call.1
$region0: #{tpu_custom_call.1}
  #allocation0 [shape = 'u32[]', space=smem, size = 0x4, offset = 0x4, fixed_abs, tag = 'smem constant byte address 0x4 - core index']
  #allocation1 [shape = 'u32[144,128]{1,0:T(1,128)}', space=vmem, size = 0x12000, scoped, tag = 'internal scratch']
  %s0 = inlined_call_operand.vmem [shape: f32[2,4,256], index: 0, kind: input, shape index: {}]
  %s1 = inlined_call_operand.vmem [shape: f32[2,32,1], index: 1, kind: input, shape index: {}]
  %s2 = inlined_call_operand.vmem [shape: f32[4,32], index: 2, kind: input, shape index: {}]
  %s3 = inlined_call_operand.vmem [shape: f32[4,1], index: 3, kind: input, shape index: {}]
  %s4 = inlined_call_operand.vmem [shape: f32[4,4], index: 4, kind: input, shape index: {}]
  %s5 = inlined_call_operand.vmem [shape: f32[4,1], index: 5, kind: input, shape index: {}]
  %s6 = inlined_call_operand.hbm [shape: f32[2,4,256], index: 6, kind: output, shape index: {}]
  %s7 = sld [smem:[#allocation0]]
  $region57: #{tpu_custom_call.1} parent=0
    _
  %s9 = ssub.s32 1, %s7
  %s10 = scalar_select 0, %s9, %s7
  $region1: #{tpu_custom_call.1} parent=0
    #allocation2 [shape = 'u8[8192]{0}', space=vmem, size = 0x2000, scoped, tag = 'output window, operand 0']
    #allocation3 [shape = 's32[2]{0}', space=sflag, size = 0x8, scoped, tag = 'scoped memory for tpu_custom_call.1']
    %11 = vsyncpa [#allocation3], 0
    %s12 = scalar_lea.sflag [#allocation3], 1
    %13 = vsyncpa %s12, 0
    loop: start=0, step=1, limit=4
    $region2: #{tpu_custom_call.1} parent=1 // loop_pre_header
      _
    $region3: #{tpu_custom_call.1} parent=1 // loop_header
      %s15 = sphi 0, %s19
      %p16 = scmp.ge.s32.totalorder %s15, 4
      %s22 = sphi 0, %s34
      %s23 = sphi 0, %s30
      %s24 = sphi 0, %s22
      %s25 = sphi 0, %s23
      %s26 = sphi 0, %s24
      %s27 = sphi 0, %s25
      %s39 = sphi 0, %s41
      %s42 = sphi 0, %s39
      %s43 = sphi 0, %s42
      %s59 = sphi 0, %s43
      %s65 = sphi 0, %s67
      %s68 = sphi 0, %s65
      %s69 = sphi 0, %s68
      %s85 = sphi 0, %s69
      %s89 = sphi 0, %s89
      %s91 = sphi 0, %s89
      %s92 = sphi 0, %s91
      %s106 = sphi 0, %s92
      %s110 = sphi 0, %s110
      %s112 = sphi 0, %s110
      %s113 = sphi 0, %s112
      %s127 = sphi 0, %s113
      %s131 = sphi 0, %s131
      %s133 = sphi 0, %s131
      %s134 = sphi 0, %s133
      %s148 = sphi 0, %s134
      %s152 = sphi 0, %s152
      %s154 = sphi 0, %s152
      %s155 = sphi 0, %s154
      %s169 = sphi 0, %s155
      %s177 = sphi 0, %s179
      %s180 = sphi 0, %s177
      %s181 = sphi 0, %s180
      %s197 = sphi 0, %s181
    $region4: #{tpu_custom_call.1} parent=1 // loop_header_branch
      %18 = sbr.rel (%p16) target = $region8
    $region5: #{tpu_custom_call.1} parent=1 // loop_body
      %s20 = ssub.s32 %s15, 1
      %s21 = ssub.s32 %s15, 2
      %s28 = sadd.s32 1, %s23
      %p29 = scmp.ge.s32.totalorder %s28, 1
      %s30 = scalar_select %p29, 0, %s28
      %s31 = sadd.s32 1, %s22
      %s32 = scalar_select %p29, %s31, %s22
      %p33 = scmp.ge.s32.totalorder %s32, 2
      %s34 = scalar_select %p33, 0, %s32
      %s35 = ssub.s32 %s22, %s34
      %s36 = ssub.s32 %s23, %s30
      %s37 = sor.u32 %s35, %s36
      %p38 = scmp.eq.s32.totalorder %s37, 0
      %s40 = sadd.s32 %s39, 1
      %s41 = scalar_select %p38, %s39, %s40
      %p44 = pneg %p38
      %p45 = scmp.eq.s32.totalorder %s15, 1
      %p46 = por %p44, %p45
      %p47 = scmp.ne.s32.totalorder %s39, %s42
      %p48 = scmp.eq.s32.totalorder %s15, 0
      %p49 = por %p47, %p48
      %p50 = scmp.ne.s32.totalorder %s39, %s42
      %p51 = scmp.eq.s32.totalorder %s20, 1
      %p52 = por %p50, %p51
      %p53 = scmp.ne.s32.totalorder %s42, %s43
      %p54 = scmp.eq.s32.totalorder %s20, 0
      %p55 = por %p53, %p54
      %p56 = scmp.ne.s32.totalorder %s42, %s43
      %p57 = scmp.eq.s32.totalorder %s21, 1
      %p58 = por %p56, %p57
      %p60 = scmp.ne.s32.totalorder %s43, %s59
      %p61 = scmp.eq.s32.totalorder %s21, 0
      %p62 = por %p60, %p61
      %s63 = ssub.s32 %s22, %s34
      %p64 = scmp.eq.s32.totalorder %s63, 0
      %s66 = sadd.s32 %s65, 1
      %s67 = scalar_select %p64, %s65, %s66
      %p70 = pneg %p64
      %p71 = scmp.eq.s32.totalorder %s15, 1
      %p72 = por %p70, %p71
      %p73 = scmp.ne.s32.totalorder %s65, %s68
      %p74 = scmp.eq.s32.totalorder %s15, 0
      %p75 = por %p73, %p74
      %p76 = scmp.ne.s32.totalorder %s65, %s68
      %p77 = scmp.eq.s32.totalorder %s20, 1
      %p78 = por %p76, %p77
      %p79 = scmp.ne.s32.totalorder %s68, %s69
      %p80 = scmp.eq.s32.totalorder %s20, 0
      %p81 = por %p79, %p80
      %p82 = scmp.ne.s32.totalorder %s68, %s69
      %p83 = scmp.eq.s32.totalorder %s21, 1
      %p84 = por %p82, %p83
      %p86 = scmp.ne.s32.totalorder %s69, %s85
      %p87 = scmp.eq.s32.totalorder %s21, 0
      %p88 = por %p86, %p87
      %s90 = sadd.s32 %s89, 1
      %p93 = scmp.eq.s32.totalorder %s15, 1
      %p94 = scmp.ne.s32.totalorder %s89, %s91
      %p95 = scmp.eq.s32.totalorder %s15, 0
      %p96 = por %p94, %p95
      %p97 = scmp.ne.s32.totalorder %s89, %s91
      %p98 = scmp.eq.s32.totalorder %s20, 1
      %p99 = por %p97, %p98
      %p100 = scmp.ne.s32.totalorder %s91, %s92
      %p101 = scmp.eq.s32.totalorder %s20, 0
      %p102 = por %p100, %p101
      %p103 = scmp.ne.s32.totalorder %s91, %s92
      %p104 = scmp.eq.s32.totalorder %s21, 1
      %p105 = por %p103, %p104
      %p107 = scmp.ne.s32.totalorder %s92, %s106
      %p108 = scmp.eq.s32.totalorder %s21, 0
      %p109 = por %p107, %p108
      %s111 = sadd.s32 %s110, 1
      %p114 = scmp.eq.s32.totalorder %s15, 1
      %p115 = scmp.ne.s32.totalorder %s110, %s112
      %p116 = scmp.eq.s32.totalorder %s15, 0
      %p117 = por %p115, %p116
      %p118 = scmp.ne.s32.totalorder %s110, %s112
      %p119 = scmp.eq.s32.totalorder %s20, 1
      %p120 = por %p118, %p119
      %p121 = scmp.ne.s32.totalorder %s112, %s113
      %p122 = scmp.eq.s32.totalorder %s20, 0
      %p123 = por %p121, %p122
      %p124 = scmp.ne.s32.totalorder %s112, %s113
      %p125 = scmp.eq.s32.totalorder %s21, 1
      %p126 = por %p124, %p125
      %p128 = scmp.ne.s32.totalorder %s113, %s127
      %p129 = scmp.eq.s32.totalorder %s21, 0
      %p130 = por %p128, %p129
      %s132 = sadd.s32 %s131, 1
      %p135 = scmp.eq.s32.totalorder %s15, 1
      %p136 = scmp.ne.s32.totalorder %s131, %s133
      %p137 = scmp.eq.s32.totalorder %s15, 0
      %p138 = por %p136, %p137
      %p139 = scmp.ne.s32.totalorder %s131, %s133
      %p140 = scmp.eq.s32.totalorder %s20, 1
      %p141 = por %p139, %p140
      %p142 = scmp.ne.s32.totalorder %s133, %s134
      %p143 = scmp.eq.s32.totalorder %s20, 0
      %p144 = por %p142, %p143
      %p145 = scmp.ne.s32.totalorder %s133, %s134
      %p146 = scmp.eq.s32.totalorder %s21, 1
      %p147 = por %p145, %p146
      %p149 = scmp.ne.s32.totalorder %s134, %s148
      %p150 = scmp.eq.s32.totalorder %s21, 0
      %p151 = por %p149, %p150
      %s153 = sadd.s32 %s152, 1
      %p156 = scmp.eq.s32.totalorder %s15, 1
      %p157 = scmp.ne.s32.totalorder %s152, %s154
      %p158 = scmp.eq.s32.totalorder %s15, 0
      %p159 = por %p157, %p158
      %p160 = scmp.ne.s32.totalorder %s152, %s154
      %p161 = scmp.eq.s32.totalorder %s20, 1
      %p162 = por %p160, %p161
      %p163 = scmp.ne.s32.totalorder %s154, %s155
      %p164 = scmp.eq.s32.totalorder %s20, 0
      %p165 = por %p163, %p164
      %p166 = scmp.ne.s32.totalorder %s154, %s155
      %p167 = scmp.eq.s32.totalorder %s21, 1
      %p168 = por %p166, %p167
      %p170 = scmp.ne.s32.totalorder %s155, %s169
      %p171 = scmp.eq.s32.totalorder %s21, 0
      %p172 = por %p170, %p171
      %s173 = ssub.s32 %s22, %s34
      %s174 = ssub.s32 %s23, %s30
      %s175 = sor.u32 %s173, %s174
      %p176 = scmp.eq.s32.totalorder %s175, 0
      %s178 = sadd.s32 %s177, 1
      %s179 = scalar_select %p176, %s177, %s178
      %p182 = pneg %p176
      %p183 = scmp.eq.s32.totalorder %s15, 1
      %p184 = por %p182, %p183
      %p185 = scmp.ne.s32.totalorder %s177, %s180
      %p186 = scmp.eq.s32.totalorder %s15, 0
      %p187 = por %p185, %p186
      %p188 = scmp.ne.s32.totalorder %s177, %s180
      %p189 = scmp.eq.s32.totalorder %s20, 1
      %p190 = por %p188, %p189
      %p191 = scmp.ne.s32.totalorder %s180, %s181
      %p192 = scmp.eq.s32.totalorder %s20, 0
      %p193 = por %p191, %p192
      %p194 = scmp.ne.s32.totalorder %s180, %s181
      %p195 = scmp.eq.s32.totalorder %s21, 1
      %p196 = por %p194, %p195
      %p198 = scmp.ne.s32.totalorder %s181, %s197
      %p199 = scmp.eq.s32.totalorder %s21, 0
      %p200 = por %p198, %p199
      %p201 = scmp.le.s32.totalorder 1, %s15
      %p202 = scmp.lt.s32.totalorder %s15, 3
      %p203 = pnand %p201, %p202
      %p204 = pneg %p203
      // Predicated region
      $region9: #{tpu_custom_call.1} parent=5 // pred_check
        _
      $region10: #{tpu_custom_call.1} parent=5 // pred_check_branch
        %206 = sbr.rel (%p203) target = $region12
      $region11: #{tpu_custom_call.1} parent=5 // pred_region
        %s207 = ssub.s32 %s15, 1
        // Predicated region
        $region13: #{tpu_custom_call.1} parent=11 // pred_check
          %p208 = pneg %p102
        $region14: #{tpu_custom_call.1} parent=11 // pred_check_branch
          %210 = sbr.rel (%p208) target = $region16
        $region15: #{tpu_custom_call.1} parent=11 // pred_region
          _
        $region16: #{tpu_custom_call.1} parent=11 // pred_fallthru
          _
        // Predicated region
        $region17: #{tpu_custom_call.1} parent=11 // pred_check
          %p211 = pneg %p123
        $region18: #{tpu_custom_call.1} parent=11 // pred_check_branch
          %213 = sbr.rel (%p211) target = $region20
        $region19: #{tpu_custom_call.1} parent=11 // pred_region
          _
        $region20: #{tpu_custom_call.1} parent=11 // pred_fallthru
          _
        // Predicated region
        $region21: #{tpu_custom_call.1} parent=11 // pred_check
          %p214 = pneg %p144
        $region22: #{tpu_custom_call.1} parent=11 // pred_check_branch
          %216 = sbr.rel (%p214) target = $region24
        $region23: #{tpu_custom_call.1} parent=11 // pred_region
          _
        $region24: #{tpu_custom_call.1} parent=11 // pred_fallthru
          _
        // Predicated region
        $region25: #{tpu_custom_call.1} parent=11 // pred_check
          %p217 = pneg %p165
        $region26: #{tpu_custom_call.1} parent=11 // pred_check_branch
          %219 = sbr.rel (%p217) target = $region28
        $region27: #{tpu_custom_call.1} parent=11 // pred_region
          _
        $region28: #{tpu_custom_call.1} parent=11 // pred_fallthru
          _
      $region12: #{tpu_custom_call.1} parent=5 // pred_fallthru
        _
      %p220 = scmp.lt.s32.totalorder %s15, 2
      // Predicated region
      $region29: #{tpu_custom_call.1} parent=5 // pred_check
        %p221 = pneg %p220
      $region30: #{tpu_custom_call.1} parent=5 // pred_check_branch
        %223 = sbr.rel (%p221) target = $region32
      $region31: #{tpu_custom_call.1} parent=5 // pred_region
        // Predicated region
        $region33: #{tpu_custom_call.1} parent=31 // pred_check
          %p224 = pneg %p49
        $region34: #{tpu_custom_call.1} parent=31 // pred_check_branch
          %226 = sbr.rel (%p224) target = $region36
        $region35: #{tpu_custom_call.1} parent=31 // pred_region
          %s227 = smul.u32 2, %s23
          %p228 = scmp.lt.s32.totalorder %s22, 1
          %s229 = scalar_select %p228, %s22, 1
          %p230 = scmp.lt.s32.totalorder %s227, 1
          %s231 = scalar_select %p230, %s227, 1
          %s232 = smul.addr %s229, 2
          %s233 = sadd.s32 %s231, %s232
          %s234 = smul.addr %s233, 4
          %s235 = scalar_lea.vmem %s0, %s234
          %s236 = smul.u32 2, %s23
        $region36: #{tpu_custom_call.1} parent=31 // pred_fallthru
          _
        // Predicated region
        $region37: #{tpu_custom_call.1} parent=31 // pred_check
          %p237 = pneg %p75
        $region38: #{tpu_custom_call.1} parent=31 // pred_check_branch
          %239 = sbr.rel (%p237) target = $region40
        $region39: #{tpu_custom_call.1} parent=31 // pred_region
          %p240 = scmp.lt.s32.totalorder %s22, 1
          %s241 = scalar_select %p240, %s22, 1
          %s242 = smul.addr %s241, 4
          %s243 = smul.addr %s242, 8
          %s244 = scalar_lea.vmem %s1, %s243
        $region40: #{tpu_custom_call.1} parent=31 // pred_fallthru
          _
      $region32: #{tpu_custom_call.1} parent=5 // pred_fallthru
        _
      %p245 = scmp.le.s32.totalorder 1, %s15
      %p246 = scmp.lt.s32.totalorder %s15, 3
      %p247 = pnand %p245, %p246
      %p248 = pneg %p247
      // Predicated region
      $region41: #{tpu_custom_call.1} parent=5 // pred_check
        _
      $region42: #{tpu_custom_call.1} parent=5 // pred_check_branch
        %250 = sbr.rel (%p247) target = $region44
      $region43: #{tpu_custom_call.1} parent=5 // pred_region
        %s251 = ssub.s32 %s15, 1
        %s252 = smul.u32 2, %s25
        %p253 = scmp.lt.s32.totalorder %s24, 1
        %s254 = scalar_select %p253, %s24, 1
        %p255 = scmp.lt.s32.totalorder %s252, 1
        %s256 = scalar_select %p255, %s252, 1
        %s257 = smul.addr %s254, 2
        %s258 = sadd.s32 %s256, %s257
        %s259 = smul.addr %s258, 4
        %s260 = scalar_lea.vmem %s0, %s259
        %p261 = pneg %p55
        %p262 = pneg %p52
        %p263 = scmp.lt.s32.totalorder %s24, 1
        %s264 = scalar_select %p263, %s24, 1
        %s265 = smul.addr %s264, 4
        %s266 = smul.addr %s265, 8
        %s267 = scalar_lea.vmem %s1, %s266
        %p268 = pneg %p81
        %p269 = pneg %p78
        %p270 = pneg %p102
        %p271 = pneg %p99
        %p272 = pneg %p123
        %p273 = pneg %p120
        %p274 = pneg %p144
        %p275 = pneg %p141
        %p276 = pneg %p165
        %p277 = pneg %p162
        %p278 = pneg %p193
        %p279 = pneg %p190
        %s280 = sand.u32 %s180, 1
        %s281 = scalar_lea.sflag [#allocation3], %s280
        %s282 = sand.u32 %s180, 1
        %s283 = smul.addr %s282, 8
        %s284 = scalar_lea.vmem [#allocation2], %s283
        %s285 = smul.u32 2, %s25
        %p286 = scmp.lt.s32.totalorder %s24, 1
        %s287 = scalar_select %p286, %s24, 1
        %p288 = scmp.lt.s32.totalorder %s285, 1
        %s289 = scalar_select %p288, %s285, 1
        %s290 = smul.addr %s287, 2
        %s291 = sadd.s32 %s289, %s290
        %s292 = smul.addr %s291, 4
        %s293 = scalar_lea.vmem %s0, %s292
        %s294 = smul.u32 2, %s25
        %p295 = scmp.lt.s32.totalorder %s24, 1
        %s296 = scalar_select %p295, %s24, 1
        %s297 = smul.addr %s296, 4
        %s298 = smul.addr %s297, 8
        %s299 = scalar_lea.vmem %s1, %s298
        %s300 = smul.u32 2, %s25
        %v301 = vld [vmem:[%s299] sm:$0xff]
        %v302 = vld [vmem:[%s299 + $0x8] sm:$0xff]
        %v303 = vld [vmem:[%s299 + $0x10] sm:$0xff]
        %v304 = vld [vmem:[%s299 + $0x18] sm:$0xff]
        %v305 = vld [vmem:[%s2] sm:$0xf]
        %v306 = vld [vmem:[%s3] sm:$0xf]
        %vm307 = vcmask 261120
        %v309 = vsel %vm307, %v305, 0
        %311 = vmatprep.subr.mxu0 0.0
        %312 = vmatpush1.msra.mxu0 %v301
        %313 = vmatprep.subr.mxu0 0.0
        %314 = vmatpush1.msra.mxu0 %v302
        %315 = vmatprep.subr.mxu0 0.0
        %316 = vmatpush1.msra.mxu0 %v303
        %317 = vmatprep.subr.mxu0 0.0
        %318 = vmatpush1.msra.mxu0 %v304
        %319 = vmatprep.subr.mxu0 0.0
        %320 = vmatpush1.msra.mxu0 0.0
        %321 = vmatprep.subr.mxu0 0.0
        %322 = vmatpush1.msra.mxu0 0.0
        %323 = vmatprep.subr.mxu0 0.0
        %324 = vmatpush1.msra.mxu0 0.0
        %325 = vmatprep.subr.mxu0 0.0
        %326 = vmatpush1.msra.mxu0 0.0
        %327 = vmatprep.subr.mxu0 0.0
        %328 = vmatpush1.msra.mxu0 0.0
        %329 = vmatprep.subr.mxu0 0.0
        %330 = vmatpush1.msra.mxu0 0.0
        %331 = vmatprep.subr.mxu0 0.0
        %332 = vmatpush1.msra.mxu0 0.0
        %333 = vmatprep.subr.mxu0 0.0
        %334 = vmatpush1.msra.mxu0 0.0
        %335 = vmatprep.subr.mxu0 0.0
        %336 = vmatpush1.msra.mxu0 0.0
        %337 = vmatprep.subr.mxu0 0.0
        %338 = vmatpush1.msra.mxu0 0.0
        %339 = vmatprep.subr.mxu0 0.0
        %340 = vmatpush1.msra.mxu0 0.0
        %341 = vmatprep.subr.mxu0 0.0
        %342 = vmatpush1.msra.mxu0 0.0
        %343 = vmatprep.subr.mxu0 0.0
        %344 = vmatpush1.msra.mxu0 0.0
        %345 = vmatprep.subr.mxu0 0.0
        %346 = vmatpush1.msra.mxu0 0.0
        %347 = vmatprep.subr.mxu0 0.0
        %348 = vmatpush1.msra.mxu0 0.0
        %349 = vmatprep.subr.mxu0 0.0
        %350 = vmatpush1.msra.mxu0 0.0
        %351 = vmatprep.subr.mxu0 0.0
        %352 = vmatpush1.msra.mxu0 0.0
        %353 = vmatprep.subr.mxu0 0.0
        %354 = vmatpush1.msra.mxu0 0.0
        %355 = vmatprep.subr.mxu0 0.0
        %356 = vmatpush1.msra.mxu0 0.0
        %357 = vmatprep.subr.mxu0 0.0
        %358 = vmatpush1.msra.mxu0 0.0
        %359 = vmatprep.subr.mxu0 0.0
        %360 = vmatpush1.msra.mxu0 0.0
        %361 = vmatprep.subr.mxu0 0.0
        %362 = vmatpush1.msra.mxu0 0.0
        %363 = vmatprep.subr.mxu0 0.0
        %364 = vmatpush1.msra.mxu0 0.0
        %365 = vmatprep.subr.mxu0 0.0
        %366 = vmatpush1.msra.mxu0 0.0
        %367 = vmatprep.subr.mxu0 0.0
        %368 = vmatpush1.msra.mxu0 0.0
        %369 = vmatprep.subr.mxu0 0.0
        %370 = vmatpush1.msra.mxu0 0.0
        %371 = vmatprep.subr.mxu0 0.0
        %372 = vmatpush1.msra.mxu0 0.0
        %373 = vmatprep.subr.mxu0 0.0
        %374 = vmatpush1.msra.mxu0 0.0
        %375 = vmatprep.mubr.f32.mxu0 0.0
        %376 = vmatmul.mubr.f32.gmra.mrb[0].mxu0 %v309
        %v377 = vpop.f32.mrb[0].mxu0
        %v378 = vadd.f32 %v306, %v377
        %v379 = vpop.f32.mrb[0].mxu0
        %380 = vdwg.mxu0
        %v381 = vld [vmem:[%s4] sm:$0xf]
        %v382 = vld [vmem:[%s5] sm:$0xf]
        %vm383 = vcmask 31744
        %v385 = vsel %vm383, %v381, 0
        %vm387 = vcmask 1043456
        %v389 = vsel %vm387, %v378, 0
        %391 = vmatprep.subr.mxu0 0.0
        %392 = vmatpush1.msra.mxu0 %v389
        %393 = vmatprep.subr.mxu0 0.0
        %394 = vmatpush1.msra.mxu0 0.0
        %395 = vmatprep.subr.mxu0 0.0
        %396 = vmatpush1.msra.mxu0 0.0
        %397 = vmatprep.subr.mxu0 0.0
        %398 = vmatpush1.msra.mxu0 0.0
        %399 = vmatprep.subr.mxu0 0.0
        %400 = vmatpush1.msra.mxu0 0.0
        %401 = vmatprep.subr.mxu0 0.0
        %402 = vmatpush1.msra.mxu0 0.0
        %403 = vmatprep.subr.mxu0 0.0
        %404 = vmatpush1.msra.mxu0 0.0
        %405 = vmatprep.subr.mxu0 0.0
        %406 = vmatpush1.msra.mxu0 0.0
        %407 = vmatprep.subr.mxu0 0.0
        %408 = vmatpush1.msra.mxu0 0.0
        %409 = vmatprep.subr.mxu0 0.0
        %410 = vmatpush1.msra.mxu0 0.0
        %411 = vmatprep.subr.mxu0 0.0
        %412 = vmatpush1.msra.mxu0 0.0
        %413 = vmatprep.subr.mxu0 0.0
        %414 = vmatpush1.msra.mxu0 0.0
        %415 = vmatprep.subr.mxu0 0.0
        %416 = vmatpush1.msra.mxu0 0.0
        %417 = vmatprep.subr.mxu0 0.0
        %418 = vmatpush1.msra.mxu0 0.0
        %419 = vmatprep.subr.mxu0 0.0
        %420 = vmatpush1.msra.mxu0 0.0
        %421 = vmatprep.subr.mxu0 0.0
        %422 = vmatpush1.msra.mxu0 0.0
        %423 = vmatprep.subr.mxu0 0.0
        %424 = vmatpush1.msra.mxu0 0.0
        %425 = vmatprep.subr.mxu0 0.0
        %426 = vmatpush1.msra.mxu0 0.0
        %427 = vmatprep.subr.mxu0 0.0
        %428 = vmatpush1.msra.mxu0 0.0
        %429 = vmatprep.subr.mxu0 0.0
        %430 = vmatpush1.msra.mxu0 0.0
        %431 = vmatprep.subr.mxu0 0.0
        %432 = vmatpush1.msra.mxu0 0.0
        %433 = vmatprep.subr.mxu0 0.0
        %434 = vmatpush1.msra.mxu0 0.0
        %435 = vmatprep.subr.mxu0 0.0
        %436 = vmatpush1.msra.mxu0 0.0
        %437 = vmatprep.subr.mxu0 0.0
        %438 = vmatpush1.msra.mxu0 0.0
        %439 = vmatprep.subr.mxu0 0.0
        %440 = vmatpush1.msra.mxu0 0.0
        %441 = vmatprep.subr.mxu0 0.0
        %442 = vmatpush1.msra.mxu0 0.0
        %443 = vmatprep.subr.mxu0 0.0
        %444 = vmatpush1.msra.mxu0 0.0
        %445 = vmatprep.subr.mxu0 0.0
        %446 = vmatpush1.msra.mxu0 0.0
        %447 = vmatprep.subr.mxu0 0.0
        %448 = vmatpush1.msra.mxu0 0.0
        %449 = vmatprep.subr.mxu0 0.0
        %450 = vmatpush1.msra.mxu0 0.0
        %451 = vmatprep.subr.mxu0 0.0
        %452 = vmatpush1.msra.mxu0 0.0
        %453 = vmatprep.subr.mxu0 0.0
        %454 = vmatpush1.msra.mxu0 0.0
        %455 = vmatprep.mubr.f32.mxu0 0.0
        %456 = vmatmul.mubr.f32.gmra.mrb[0].mxu0 %v385
        %v457 = vpop.f32.mrb[0].mxu0
        %v458 = vadd.f32 %v382, %v457
        %v459 = vpop.f32.mrb[0].mxu0
        %460 = vdwg.mxu0
        %v461 = vld [vmem:[%s293] sm:$0xff]
        %463 = vset.pattern.permute.xlu0 0
        %464 = vperm.xlu0 %463, %v458
        %v465 = vpop.permute.xlu0 %464
        %v467 = vunpack.c.l.s4 839922192
        %v468 = vunpack.c.0.s8 %v467
        %v469 = vlaneseq
        %v470 = vshrl.u32 %v469, 7
        %v471 = vsub.s32 %v468, %v470
        %v472 = vrot.slane %v465, %v471
        %v474 = vadd.f32 %v461, %v472
        %475 = vst [vmem:[%s284] sm:$0xff] %v474
        %s476 = sand.u32 %s180, 1
        %s477 = scalar_lea.sflag [#allocation3], %s476
        %s478 = sand.u32 %s180, 1
        %s479 = smul.addr %s478, 8
        %s480 = scalar_lea.vmem [#allocation2], %s479
        // Predicated region
        $region45: #{tpu_custom_call.1} parent=43 // pred_check
          %p481 = pneg %p190
        $region46: #{tpu_custom_call.1} parent=43 // pred_check_branch
          %483 = sbr.rel (%p481) target = $region48
        $region47: #{tpu_custom_call.1} parent=43 // pred_region
          %s484 = smul.u32 2, %s25
          %s486 = ssub.s32 128, 128
          %487 = vsyncadd %s477, %s486
          %s488 = smul.addr %s24, 2
          %s489 = sadd.s32 %s484, %s488
          %s490 = smul.addr %s489, 64
          %s491 = scalar_lea.hbm %s6, %s490
          %s493 = sshll.u32 %s480, 4
          %s494 = int_to_ptr.vmem [resolvable:$true] %s493
          %496 = dma.vmem_to_hbm [thread:$0]  %s494, 128, %s491, %s477
        $region48: #{tpu_custom_call.1} parent=43 // pred_fallthru
          _
      $region44: #{tpu_custom_call.1} parent=5 // pred_fallthru
        _
      %p497 = scmp.le.s32.totalorder 2, %s15
      // Predicated region
      $region49: #{tpu_custom_call.1} parent=5 // pred_check
        %p498 = pneg %p497
      $region50: #{tpu_custom_call.1} parent=5 // pred_check_branch
        %500 = sbr.rel (%p498) target = $region52
      $region51: #{tpu_custom_call.1} parent=5 // pred_region
        %s501 = ssub.s32 %s15, 2
        // Predicated region
        $region53: #{tpu_custom_call.1} parent=51 // pred_check
          %p502 = pneg %p196
        $region54: #{tpu_custom_call.1} parent=51 // pred_check_branch
          %504 = sbr.rel (%p502) target = $region56
        $region55: #{tpu_custom_call.1} parent=51 // pred_region
          %s505 = sand.u32 %s181, 1
          %s506 = scalar_lea.sflag [#allocation3], %s505
          %s507 = sand.u32 %s181, 1
          %s508 = smul.addr %s507, 8
          %s509 = scalar_lea.vmem [#allocation2], %s508
          %510 = dma.done %s506, 128
        $region56: #{tpu_custom_call.1} parent=51 // pred_fallthru
          _
      $region52: #{tpu_custom_call.1} parent=5 // pred_fallthru
        _
    $region6: #{tpu_custom_call.1} parent=1 // loop_footer
      %s19 = sadd.s32 1, %s15
    $region7: #{tpu_custom_call.1} parent=1 // loop_footer_branch
      %14 = sbr.rel target = $region3
    $region8: #{tpu_custom_call.1} parent=1 // loop_exit
      _
    %511 = vsyncpa [#allocation3], 1
    %s512 = scalar_lea.sflag [#allocation3], 1
    %513 = vsyncpa %s512, 1

</llo_original>
